<compile_context>
chip_gen: v5e
topology: v5e:2x2
jax: 0.10.0
libtpu: 0.0.40
codegen_flags: <defaults>
</compile_context>

<pallas_src>
import jax
import jax.numpy as jnp
from jax import lax
from jax.experimental import pallas as pl
from jax.experimental.pallas import tpu as pltpu


# ---------------------------------------------------------------------------
# Generic (M,K) @ (K,N) + bias kernel, tiled over M and N.  K (= E_pad or H_pad)
# stays untiled: it is small for this model, and keeping it whole avoids an
# accumulator/"arbitrary" axis so both grid axes stay parallel.
# ---------------------------------------------------------------------------
def _matmul_bias_kernel(x_ref, w_ref, b_ref, o_ref):
    o_ref[...] = (jnp.dot(x_ref[...], w_ref[...],
                          preferred_element_type=jnp.float32)
                  + b_ref[...]).astype(o_ref.dtype)


def _pick_tile(dim, candidates):
    for c in candidates:
        if dim % c == 0:
            return c
    return dim


def matmul_bias(x, w, b):
    """x: (M, K), w: (K, N), b: (1, N); M mult of 8, K/N mult of 128."""
    M, K = x.shape
    N = w.shape[1]
    TN = _pick_tile(N, (512, 256, 128))
    TM = _pick_tile(M, (256, 128, 64, 32, 16, 8))
    return pl.pallas_call(
        _matmul_bias_kernel,
        out_shape=jax.ShapeDtypeStruct((M, N), jnp.float32),
        grid=(M // TM, N // TN),
        in_specs=[
            pl.BlockSpec((TM, K), lambda i, j: (i, 0)),
            pl.BlockSpec((K, TN), lambda i, j: (0, j)),
            pl.BlockSpec((1, TN), lambda i, j: (0, j)),
        ],
        out_specs=pl.BlockSpec((TM, TN), lambda i, j: (i, j)),
        compiler_params=pltpu.CompilerParams(
            dimension_semantics=("parallel", "parallel")),
    )(x, w, b)


# ---------------------------------------------------------------------------
# Recurrent LSTM kernel: only h @ W_hh^T stays on the serial path.
# grid = (num_chunks,); each chunk runs up to 32 time steps with an unrolled
# fori_loop; h/c are carried across chunks in VMEM scratch.
# ---------------------------------------------------------------------------
def _lstm_recurrence_kernel(gx_ref, whh_ref, h0_ref, c0_ref,
                            h_all_ref, hT_ref, cT_ref,
                            h_scr, c_scr):
    chunk = pl.program_id(0)

    @pl.when(chunk == 0)
    def _():
        h_scr[...] = h0_ref[...]
        c_scr[...] = c0_ref[...]

    H = h_scr.shape[-1]          # padded hidden size (multiple of 128)
    ct = gx_ref.shape[0]         # static chunk length

    def step(t, carry):
        h, c = carry
        # gates_x already contains x @ W_ih^T + (b_ih + b_hh)
        gates = gx_ref[t] + jnp.dot(h, whh_ref[...],
                                    preferred_element_type=jnp.float32)
        # lane-aligned gate slices (H is a multiple of 128)
        i_g = jax.nn.sigmoid(gates[:, 0 * H:1 * H])
        f_g = jax.nn.sigmoid(gates[:, 1 * H:2 * H])
        g_g = jnp.tanh(gates[:, 2 * H:3 * H])
        o_g = jax.nn.sigmoid(gates[:, 3 * H:4 * H])
        c_new = f_g * c + i_g * g_g
        h_new = o_g * jnp.tanh(c_new)
        h_all_ref[t] = h_new
        return (h_new, c_new)

    h, c = lax.fori_loop(0, ct, step, (h_scr[...], c_scr[...]), unroll=True)
    h_scr[...] = h
    c_scr[...] = c

    @pl.when(chunk == pl.num_programs(0) - 1)
    def _():
        hT_ref[...] = h
        cT_ref[...] = c


def _lstm_recurrence(gx, w_hh_T, h0, c0, chunk_t):
    T, Bp, G4 = gx.shape
    Hp = h0.shape[-1]
    n_chunks = T // chunk_t
    return pl.pallas_call(
        _lstm_recurrence_kernel,
        out_shape=(
            jax.ShapeDtypeStruct((T, Bp, Hp), jnp.float32),   # h for every step
            jax.ShapeDtypeStruct((Bp, Hp), jnp.float32),      # final h
            jax.ShapeDtypeStruct((Bp, Hp), jnp.float32),      # final c
        ),
        grid=(n_chunks,),
        in_specs=[
            pl.BlockSpec((chunk_t, Bp, G4), lambda i: (i, 0, 0)),  # gates_x chunk
            pl.BlockSpec((Hp, G4), lambda i: (0, 0)),              # W_hh^T (invariant)
            pl.BlockSpec((Bp, Hp), lambda i: (0, 0)),              # h0 (invariant)
            pl.BlockSpec((Bp, Hp), lambda i: (0, 0)),              # c0 (invariant)
        ],
        out_specs=(
            pl.BlockSpec((chunk_t, Bp, Hp), lambda i: (i, 0, 0)),
            pl.BlockSpec((Bp, Hp), lambda i: (0, 0)),
            pl.BlockSpec((Bp, Hp), lambda i: (0, 0)),
        ),
        scratch_shapes=[
            pltpu.VMEM((Bp, Hp), jnp.float32),   # running h
            pltpu.VMEM((Bp, Hp), jnp.float32),   # running c
        ],
        compiler_params=pltpu.CompilerParams(
            dimension_semantics=("arbitrary",)),
    )(gx, w_hh_T, h0, c0)


# ---------------------------------------------------------------------------
# Wrapper: pad to hardware tiles, hoisted input projection -> recurrence ->
# hoisted output projection, then slice back to logical shapes.
# ---------------------------------------------------------------------------
def _round_up(x, m):
    return (x + m - 1) // m * m


def _pad_to(x, shape):
    return jnp.pad(x, [(0, s - d) for d, s in zip(x.shape, shape)])


def decoder_lstm_forward(x_emb, w_ih, w_hh, b_ih, b_hh, w_out, b_out, h0, c0):
    """x_emb: (T, B, E) time-major embedded teacher-forced tokens.

    w_ih: (4H, E), w_hh: (4H, H), b_ih/b_hh: (4H,)   (PyTorch nn.LSTM layout)
    w_out: (V, H), b_out: (V,)                        (PyTorch nn.Linear layout)
    h0, c0: (B, H)
    returns (logits (T, B, V), h_T (B, H), c_T (B, H))
    """
    T, B, E = x_emb.shape
    H = h0.shape[-1]
    V = w_out.shape[0]

    Bp = _round_up(B, 8)          # sublane tile
    Ep = _round_up(E, 128)        # lane tile
    Hp = _round_up(H, 128)
    Vp = _round_up(V, 128)

    # Per-gate padding so the [i, f, g, o] packing survives H -> Hp.
    w_ih_p = _pad_to(w_ih.reshape(4, H, E), (4, Hp, Ep)).reshape(4 * Hp, Ep)
    w_hh_p = _pad_to(w_hh.reshape(4, H, H), (4, Hp, Hp)).reshape(4 * Hp, Hp)
    b_p = _pad_to((b_ih + b_hh).reshape(4, H), (4, Hp)).reshape(1, 4 * Hp)
    w_out_p = _pad_to(w_out, (Vp, Hp))
    b_out_p = _pad_to(b_out.reshape(1, V), (1, Vp))

    x_p = _pad_to(x_emb, (T, Bp, Ep))
    h0_p = _pad_to(h0, (Bp, Hp))
    c0_p = _pad_to(c0, (Bp, Hp))

    # (1) hoisted input projection: one large MXU matmul over all T*B rows.
    gx = matmul_bias(x_p.reshape(T * Bp, Ep), w_ih_p.T, b_p)
    gx = gx.reshape(T, Bp, 4 * Hp)

    # (2) serial recurrence (chunked time loop inside the kernel).
    chunk_t = max(c for c in range(1, min(T, 32) + 1) if T % c == 0)
    h_all, hT, cT = _lstm_recurrence(gx, w_hh_p.T, h0_p, c0_p, chunk_t)

    # (3) hoisted output projection over all T*B hidden states, tiled over (M, V).
    logits = matmul_bias(h_all.reshape(T * Bp, Hp), w_out_p.T, b_out_p)
    logits = logits.reshape(T, Bp, Vp)

    return logits[:, :B, :V], hT[:B, :H], cT[:B, :H]


# ---------------------------------------------------------------------------
# Pure-JAX reference of the same teacher-forced decode loop (unpadded).
# ---------------------------------------------------------------------------
def reference_forward(x_emb, w_ih, w_hh, b_ih, b_hh, w_out, b_out, h0, c0):
    H = h0.shape[-1]
    w_ih_T, w_hh_T, b = w_ih.T, w_hh.T, b_ih + b_hh

    def step(carry, x):
        h, c = carry
        gates = x @ w_ih_T + h @ w_hh_T + b
        i_g = jax.nn.sigmoid(gates[:, 0 * H:1 * H])
        f_g = jax.nn.sigmoid(gates[:, 1 * H:2 * H])
        g_g = jnp.tanh(gates[:, 2 * H:3 * H])
        o_g = jax.nn.sigmoid(gates[:, 3 * H:4 * H])
        c_new = f_g * c + i_g * g_g
        h_new = o_g * jnp.tanh(c_new)
        return (h_new, c_new), h_new @ w_out.T + b_out

    (hT, cT), logits = jax.lax.scan(step, (h0, c0), x_emb)
    return logits, hT, cT


if __name__ == "__main__":
    # Small shapes consistent with DecoderLSTM (num_layers=1, unidirectional,
    # teacher_forcing_ratio=1.0 -> deterministic teacher-forcing branch).
    vocab_size = 32      # weights_matrix rows
    input_size = 16      # weights_matrix cols (embedding dim E)
    hidden_size = 32     # H
    output_size = 16     # V
    batch = 4            # B
    max_target_len = 8   # T

    key = jax.random.PRNGKey(0)
    keys = jax.random.split(key, 10)

    # Frozen embedding table (the "weights_matrix").
    emb_table = jax.random.normal(keys[0], (vocab_size, input_size), jnp.float32)

    # nn.LSTM parameters (gate order i, f, g, o), PyTorch layout.
    w_ih = 0.1 * jax.random.normal(keys[1], (4 * hidden_size, input_size), jnp.float32)
    w_hh = 0.1 * jax.random.normal(keys[2], (4 * hidden_size, hidden_size), jnp.float32)
    b_ih = 0.1 * jax.random.normal(keys[3], (4 * hidden_size,), jnp.float32)
    b_hh = 0.1 * jax.random.normal(keys[4], (4 * hidden_size,), jnp.float32)

    # nn.Linear out: (output_size, hidden_size) + bias.
    w_out = 0.1 * jax.random.normal(keys[5], (output_size, hidden_size), jnp.float32)
    b_out = 0.1 * jax.random.normal(keys[6], (output_size,), jnp.float32)

    # forward() inputs: dec_input (B, 1) token ids, dec_hidden (h0, c0),
    # targets (B, T) token ids, teacher_forcing_ratio = 1.0.
    dec_input = jax.random.randint(keys[7], (batch, 1), 0, vocab_size)
    targets = jax.random.randint(keys[8], (batch, max_target_len), 0, vocab_size)
    h0 = jnp.zeros((batch, hidden_size), jnp.float32)
    c0 = jnp.zeros((batch, hidden_size), jnp.float32)

    # Teacher forcing: token fed at step t is dec_input for t=0, targets[:, t-1] after.
    token_seq = jnp.concatenate(
        [dec_input[:, 0][None, :], targets[:, :max_target_len - 1].T], axis=0)  # (T, B)
    x_emb = jnp.take(emb_table, token_seq, axis=0)                              # (T, B, E)

    logits, hT, cT = decoder_lstm_forward(
        x_emb, w_ih, w_hh, b_ih, b_hh, w_out, b_out, h0, c0)
    jax.block_until_ready((logits, hT, cT))

    ref_logits, ref_hT, ref_cT = reference_forward(
        x_emb, w_ih, w_hh, b_ih, b_hh, w_out, b_out, h0, c0)

    assert jnp.allclose(logits, ref_logits, atol=1e-5, rtol=1e-5)
    assert jnp.allclose(hT, ref_hT, atol=1e-5, rtol=1e-5)
    assert jnp.allclose(cT, ref_cT, atol=1e-5, rtol=1e-5)

    # TODO(synk): the non-teacher-forcing branch (softmax -> argmax -> embedding
    # gather fed back each step) needs a data-dependent per-step gather; not
    # implemented here.  The random.random() coin flip is assumed ratio=1.0.
    print("KERNEL_OK")
</pallas_src>

<mosaic_0001>
module attributes {stable_mosaic.version = 11 : i64} {
  func.func @_matmul_bias_kernel(%arg0: i32, %arg1: i32, %arg2: memref<64x128xf32, #tpu.memory_space<vmem>>, %arg3: memref<128x512xf32, #tpu.memory_space<vmem>>, %arg4: memref<1x512xf32, #tpu.memory_space<vmem>>, %arg5: memref<64x512xf32, #tpu.memory_space<vmem>>) attributes {dimension_semantics = [#tpu.dimension_semantics<parallel>, #tpu.dimension_semantics<parallel>], iteration_bounds = array<i64: 1, 1>, scalar_prefetch = 0 : i64, scratch_operands = 0 : i64, tpu.core_type = #tpu.core_type<tc>, window_params = [{transform_indices = @transform_0, window_bounds = array<i64: 64, 128>}, {transform_indices = @transform_1, window_bounds = array<i64: 128, 512>}, {transform_indices = @transform_2, window_bounds = array<i64: 1, 512>}, {transform_indices = @transform_3, window_bounds = array<i64: 64, 512>}]} {
    %c0 = arith.constant 0 : index
    %c0_0 = arith.constant 0 : index
    %0 = vector.load %arg2[%c0, %c0_0] : memref<64x128xf32, #tpu.memory_space<vmem>>, vector<64x128xf32>
    %c0_1 = arith.constant 0 : index
    %c0_2 = arith.constant 0 : index
    %1 = vector.load %arg3[%c0_1, %c0_2] : memref<128x512xf32, #tpu.memory_space<vmem>>, vector<128x512xf32>
    %cst = arith.constant dense<0.000000e+00> : vector<64x512xf32>
    %2 = tpu.matmul %0, %1, %cst {dimension_numbers = #tpu.dot_dimension_numbers<[1], [0], [0], [1], [0, 0, 1, 1], [], []>} : vector<64x128xf32>, vector<128x512xf32>, vector<64x512xf32> -> vector<64x512xf32>
    %c0_3 = arith.constant 0 : index
    %c0_4 = arith.constant 0 : index
    %3 = vector.load %arg4[%c0_3, %c0_4] : memref<1x512xf32, #tpu.memory_space<vmem>>, vector<1x512xf32>
    %4 = vector.broadcast %3 : vector<1x512xf32> to vector<64x512xf32>
    %5 = arith.addf %2, %4 : vector<64x512xf32>
    %c0_5 = arith.constant 0 : index
    %c0_6 = arith.constant 0 : index
    %6 = vector.load %arg5[%c0_5, %c0_6] : memref<64x512xf32, #tpu.memory_space<vmem>>, vector<64x512xf32>
    tpu.vector_store %arg5[%c0_5, %c0_6], %5 {strides = array<i32>} : memref<64x512xf32, #tpu.memory_space<vmem>>, vector<64x512xf32>,
    return
  }
  func.func @transform_0(%arg0: i32, %arg1: i32) -> (i32, i32) {
    %c0_i32 = arith.constant 0 : i32
    %c0_i32_0 = arith.constant 0 : i32
    return %arg0, %c0_i32 : i32, i32
  }
  func.func @transform_1(%arg0: i32, %arg1: i32) -> (i32, i32) {
    %c0_i32 = arith.constant 0 : i32
    %c0_i32_0 = arith.constant 0 : i32
    return %c0_i32, %arg1 : i32, i32
  }
  func.func @transform_2(%arg0: i32, %arg1: i32) -> (i32, i32) {
    %c0_i32 = arith.constant 0 : i32
    %c0_i32_0 = arith.constant 0 : i32
    return %c0_i32, %arg1 : i32, i32
  }
  func.func @transform_3(%arg0: i32, %arg1: i32) -> (i32, i32) {
    %c0_i32 = arith.constant 0 : i32
    return %arg0, %arg1 : i32, i32
  }
}

</mosaic_0001>

<llo_original>
// kernel: tpu_custom_call.1
$region0: #{tpu_custom_call.1}
  #allocation0 [shape = 'u32[]', space=smem, size = 0x4, offset = 0x4, fixed_abs, tag = 'smem constant byte address 0x4 - core index']
  #allocation1 [shape = 'u32[72,128]{1,0:T(1,128)}', space=vmem, size = 0x9000, scoped, tag = 'internal scratch']
  %s0 = inlined_call_operand.hbm [shape: f32[64,128], index: 0, kind: input, shape index: {}]
  %s1 = inlined_call_operand.hbm [shape: f32[128,512], index: 1, kind: input, shape index: {}]
  %s2 = inlined_call_operand.hbm [shape: f32[1,512], index: 2, kind: input, shape index: {}]
  %s3 = inlined_call_operand.hbm [shape: f32[64,512], index: 3, kind: output, shape index: {}]
  %s4 = sld [smem:[#allocation0]]
  $region34: #{tpu_custom_call.1} parent=0
    _
  %s6 = ssub.s32 1, %s4
  %s7 = scalar_select 0, %s6, %s4
  $region1: #{tpu_custom_call.1} parent=0
    #allocation2 [shape = 'u8[32768]{0}', space=vmem, size = 0x8000, scoped, tag = 'input window, operand 0, single buffered']
    #allocation3 [shape = 's32[1]{0}', space=sflag, size = 0x4, scoped, tag = 'scoped memory for tpu_custom_call.1']
    #allocation4 [shape = 's32[1]{0}', space=sflag, size = 0x4, scoped, tag = 'scoped memory for tpu_custom_call.1']
    #allocation5 [shape = 'u8[262144]{0}', space=vmem, size = 0x40000, scoped, tag = 'input window, operand 1, single buffered']
    #allocation6 [shape = 's32[1]{0}', space=sflag, size = 0x4, scoped, tag = 'scoped memory for tpu_custom_call.1']
    #allocation7 [shape = 'u8[2048]{0}', space=vmem, size = 0x800, scoped, tag = 'input window, operand 2, single buffered']
    #allocation8 [shape = 'u8[131072]{0}', space=vmem, size = 0x20000, scoped, tag = 'output window, operand 0, single buffered']
    %8 = vsyncpa [#allocation3], 0
    %9 = vsyncpa [#allocation6], 0
    %10 = vsyncpa [#allocation4], 0
    // Predicated region
    $region2: #{tpu_custom_call.1} parent=1 // pred_check
      _
    $region3: #{tpu_custom_call.1} parent=1 // pred_check_branch
      %12 = sbr.rel (0) target = $region5
    $region4: #{tpu_custom_call.1} parent=1 // pred_region
      %14 = vsyncadd [#allocation3], 0
      %s15 = sshll.u32 %s0, 4
      %s16 = int_to_ptr.hbm [resolvable:$true] %s15
      %s17 = sshll.u32 [#allocation2], 4
      %s18 = int_to_ptr.vmem [resolvable:$true] %s17
      %23 = dma.hbm_to_vmem [thread:$0]  %s16, 1024, %s18, [#allocation3], 128, 128, 8
    $region5: #{tpu_custom_call.1} parent=1 // pred_fallthru
      _
    // Predicated region
    $region6: #{tpu_custom_call.1} parent=1 // pred_check
      _
    $region7: #{tpu_custom_call.1} parent=1 // pred_check_branch
      %25 = sbr.rel (0) target = $region9
    $region8: #{tpu_custom_call.1} parent=1 // pred_region
      %27 = vsyncadd [#allocation6], 0
      %s28 = sshll.u32 %s1, 4
      %s29 = int_to_ptr.hbm [resolvable:$true] %s28
      %s30 = sshll.u32 [#allocation5], 4
      %s31 = int_to_ptr.vmem [resolvable:$true] %s30
      %36 = dma.hbm_to_vmem [thread:$0]  %s29, 8192, %s31, [#allocation6], 512, 512, 32
    $region9: #{tpu_custom_call.1} parent=1 // pred_fallthru
      _
    // Predicated region
    $region10: #{tpu_custom_call.1} parent=1 // pred_check
      _
    $region11: #{tpu_custom_call.1} parent=1 // pred_check_branch
      %38 = sbr.rel (0) target = $region13
    $region12: #{tpu_custom_call.1} parent=1 // pred_region
      %40 = vsyncadd [#allocation6], 0
      %s42 = sshll.u32 %s2, 4
      %s43 = int_to_ptr.hbm [resolvable:$true] %s42
      %s44 = sshll.u32 [#allocation7], 4
      %s45 = int_to_ptr.vmem [resolvable:$true] %s44
      %47 = dma.hbm_to_vmem [thread:$0]  %s43, 64, %s45, [#allocation6]
    $region13: #{tpu_custom_call.1} parent=1 // pred_fallthru
      _
    // Predicated region
    $region14: #{tpu_custom_call.1} parent=1 // pred_check
      _
    $region15: #{tpu_custom_call.1} parent=1 // pred_check_branch
      %49 = sbr.rel (0) target = $region17
    $region16: #{tpu_custom_call.1} parent=1 // pred_region
      %51 = dma.done [#allocation3], 1024
    $region17: #{tpu_custom_call.1} parent=1 // pred_fallthru
      _
    // Predicated region
    $region18: #{tpu_custom_call.1} parent=1 // pred_check
      _
    $region19: #{tpu_custom_call.1} parent=1 // pred_check_branch
      %53 = sbr.rel (0) target = $region21
    $region20: #{tpu_custom_call.1} parent=1 // pred_region
      %55 = dma.done [#allocation6], 8192
    $region21: #{tpu_custom_call.1} parent=1 // pred_fallthru
      _
    // Predicated region
    $region22: #{tpu_custom_call.1} parent=1 // pred_check
      _
    $region23: #{tpu_custom_call.1} parent=1 // pred_check_branch
      %57 = sbr.rel (0) target = $region25
    $region24: #{tpu_custom_call.1} parent=1 // pred_region
      %59 = dma.done [#allocation6], 64
    $region25: #{tpu_custom_call.1} parent=1 // pred_fallthru
      _
    %v60 = vld [vmem:[#allocation2] sm:$0xff]
    %v61 = vld [vmem:[#allocation2 + $0x8] sm:$0xff]
    %v62 = vld [vmem:[#allocation2 + $0x10] sm:$0xff]
    %v63 = vld [vmem:[#allocation2 + $0x18] sm:$0xff]
    %v64 = vld [vmem:[#allocation2 + $0x20] sm:$0xff]
    %v65 = vld [vmem:[#allocation2 + $0x28] sm:$0xff]
    %v66 = vld [vmem:[#allocation2 + $0x30] sm:$0xff]
    %v67 = vld [vmem:[#allocation2 + $0x38] sm:$0xff]
    %v68 = vld [vmem:[#allocation5] sm:$0xff]
    %v69 = vld [vmem:[#allocation5 + $0x8] sm:$0xff]
    %v70 = vld [vmem:[#allocation5 + $0x10] sm:$0xff]
    %v71 = vld [vmem:[#allocation5 + $0x18] sm:$0xff]
    %v72 = vld [vmem:[#allocation5 + $0x20] sm:$0xff]
    %v73 = vld [vmem:[#allocation5 + $0x28] sm:$0xff]
    %v74 = vld [vmem:[#allocation5 + $0x30] sm:$0xff]
    %v75 = vld [vmem:[#allocation5 + $0x38] sm:$0xff]
    %v76 = vld [vmem:[#allocation5 + $0x40] sm:$0xff]
    %v77 = vld [vmem:[#allocation5 + $0x48] sm:$0xff]
    %v78 = vld [vmem:[#allocation5 + $0x50] sm:$0xff]
    %v79 = vld [vmem:[#allocation5 + $0x58] sm:$0xff]
    %v80 = vld [vmem:[#allocation5 + $0x60] sm:$0xff]
    %v81 = vld [vmem:[#allocation5 + $0x68] sm:$0xff]
    %v82 = vld [vmem:[#allocation5 + $0x70] sm:$0xff]
    %v83 = vld [vmem:[#allocation5 + $0x78] sm:$0xff]
    %v84 = vld [vmem:[#allocation5 + $0x80] sm:$0xff]
    %v85 = vld [vmem:[#allocation5 + $0x88] sm:$0xff]
    %v86 = vld [vmem:[#allocation5 + $0x90] sm:$0xff]
    %v87 = vld [vmem:[#allocation5 + $0x98] sm:$0xff]
    %v88 = vld [vmem:[#allocation5 + $0xa0] sm:$0xff]
    %v89 = vld [vmem:[#allocation5 + $0xa8] sm:$0xff]
    %v90 = vld [vmem:[#allocation5 + $0xb0] sm:$0xff]
    %v91 = vld [vmem:[#allocation5 + $0xb8] sm:$0xff]
    %v92 = vld [vmem:[#allocation5 + $0xc0] sm:$0xff]
    %v93 = vld [vmem:[#allocation5 + $0xc8] sm:$0xff]
    %v94 = vld [vmem:[#allocation5 + $0xd0] sm:$0xff]
    %v95 = vld [vmem:[#allocation5 + $0xd8] sm:$0xff]
    %v96 = vld [vmem:[#allocation5 + $0xe0] sm:$0xff]
    %v97 = vld [vmem:[#allocation5 + $0xe8] sm:$0xff]
    %v98 = vld [vmem:[#allocation5 + $0xf0] sm:$0xff]
    %v99 = vld [vmem:[#allocation5 + $0xf8] sm:$0xff]
    %v100 = vld [vmem:[#allocation5 + $0x100] sm:$0xff]
    %v101 = vld [vmem:[#allocation5 + $0x108] sm:$0xff]
    %v102 = vld [vmem:[#allocation5 + $0x110] sm:$0xff]
    %v103 = vld [vmem:[#allocation5 + $0x118] sm:$0xff]
    %v104 = vld [vmem:[#allocation5 + $0x120] sm:$0xff]
    %v105 = vld [vmem:[#allocation5 + $0x128] sm:$0xff]
    %v106 = vld [vmem:[#allocation5 + $0x130] sm:$0xff]
    %v107 = vld [vmem:[#allocation5 + $0x138] sm:$0xff]
    %v108 = vld [vmem:[#allocation5 + $0x140] sm:$0xff]
    %v109 = vld [vmem:[#allocation5 + $0x148] sm:$0xff]
    %v110 = vld [vmem:[#allocation5 + $0x150] sm:$0xff]
    %v111 = vld [vmem:[#allocation5 + $0x158] sm:$0xff]
    %v112 = vld [vmem:[#allocation5 + $0x160] sm:$0xff]
    %v113 = vld [vmem:[#allocation5 + $0x168] sm:$0xff]
    %v114 = vld [vmem:[#allocation5 + $0x170] sm:$0xff]
    %v115 = vld [vmem:[#allocation5 + $0x178] sm:$0xff]
    %v116 = vld [vmem:[#allocation5 + $0x180] sm:$0xff]
    %v117 = vld [vmem:[#allocation5 + $0x188] sm:$0xff]
    %v118 = vld [vmem:[#allocation5 + $0x190] sm:$0xff]
    %v119 = vld [vmem:[#allocation5 + $0x198] sm:$0xff]
    %v120 = vld [vmem:[#allocation5 + $0x1a0] sm:$0xff]
    %v121 = vld [vmem:[#allocation5 + $0x1a8] sm:$0xff]
    %v122 = vld [vmem:[#allocation5 + $0x1b0] sm:$0xff]
    %v123 = vld [vmem:[#allocation5 + $0x1b8] sm:$0xff]
    %v124 = vld [vmem:[#allocation5 + $0x1c0] sm:$0xff]
    %v125 = vld [vmem:[#allocation5 + $0x1c8] sm:$0xff]
    %v126 = vld [vmem:[#allocation5 + $0x1d0] sm:$0xff]
    %v127 = vld [vmem:[#allocation5 + $0x1d8] sm:$0xff]
    %v128 = vld [vmem:[#allocation5 + $0x1e0] sm:$0xff]
    %v129 = vld [vmem:[#allocation5 + $0x1e8] sm:$0xff]
    %v130 = vld [vmem:[#allocation5 + $0x1f0] sm:$0xff]
    %v131 = vld [vmem:[#allocation5 + $0x1f8] sm:$0xff]
    %v132 = vld [vmem:[#allocation7] sm:$0xf]
    %v134 = vperm.slane %v132, 0
    %v135 = vperm.slane %v132, 1
    %v136 = vperm.slane %v132, 2
    %v137 = vperm.slane %v132, 3
    %142 = vmatpush.msra.mxu0 %v128
    %143 = vmatpush.msra.mxu0 %v124
    %144 = vmatpush.msra.mxu0 %v120
    %145 = vmatpush.msra.mxu0 %v116
    %146 = vmatpush.msra.mxu0 %v112
    %147 = vmatpush.msra.mxu0 %v108
    %148 = vmatpush.msra.mxu0 %v104
    %149 = vmatpush.msra.mxu0 %v100
    %150 = vmatpush.msra.mxu0 %v96
    %151 = vmatpush.msra.mxu0 %v92
    %152 = vmatpush.msra.mxu0 %v88
    %153 = vmatpush.msra.mxu0 %v84
    %154 = vmatpush.msra.mxu0 %v80
    %155 = vmatpush.msra.mxu0 %v76
    %156 = vmatpush.msra.mxu0 %v72
    %157 = vmatpush.msra.mxu0 %v68
    %158 = vmatmul.f32.gmra.mxu0 %v60
    %v159 = vpop.f32.mrf.mxu0
    %v160 = vadd.f32 %v134, %v159
    %161 = vmatmul.f32.gmra.mxu0 %v61
    %v162 = vpop.f32.mrf.mxu0
    %v163 = vadd.f32 %v134, %v162
    %164 = vmatmul.f32.gmra.mxu0 %v62
    %v165 = vpop.f32.mrf.mxu0
    %v166 = vadd.f32 %v134, %v165
    %167 = vmatmul.f32.gmra.mxu0 %v63
    %v168 = vpop.f32.mrf.mxu0
    %v169 = vadd.f32 %v134, %v168
    %170 = vmatmul.f32.gmra.mxu0 %v64
    %v171 = vpop.f32.mrf.mxu0
    %v172 = vadd.f32 %v134, %v171
    %173 = vmatmul.f32.gmra.mxu0 %v65
    %v174 = vpop.f32.mrf.mxu0
    %v175 = vadd.f32 %v134, %v174
    %176 = vmatmul.f32.gmra.mxu0 %v66
    %v177 = vpop.f32.mrf.mxu0
    %v178 = vadd.f32 %v134, %v177
    %179 = vmatmul.f32.gmra.mxu0 %v67
    %v180 = vpop.f32.mrf.mxu0
    %v181 = vadd.f32 %v134, %v180
    %182 = vdwg.mxu0
    %183 = vmatpush.msra.mxu0 %v129
    %184 = vmatpush.msra.mxu0 %v125
    %185 = vmatpush.msra.mxu0 %v121
    %186 = vmatpush.msra.mxu0 %v117
    %187 = vmatpush.msra.mxu0 %v113
    %188 = vmatpush.msra.mxu0 %v109
    %189 = vmatpush.msra.mxu0 %v105
    %190 = vmatpush.msra.mxu0 %v101
    %191 = vmatpush.msra.mxu0 %v97
    %192 = vmatpush.msra.mxu0 %v93
    %193 = vmatpush.msra.mxu0 %v89
    %194 = vmatpush.msra.mxu0 %v85
    %195 = vmatpush.msra.mxu0 %v81
    %196 = vmatpush.msra.mxu0 %v77
    %197 = vmatpush.msra.mxu0 %v73
    %198 = vmatpush.msra.mxu0 %v69
    %199 = vmatmul.f32.gmra.mxu0 %v60
    %v200 = vpop.f32.mrf.mxu0
    %v201 = vadd.f32 %v135, %v200
    %202 = vmatmul.f32.gmra.mxu0 %v61
    %v203 = vpop.f32.mrf.mxu0
    %v204 = vadd.f32 %v135, %v203
    %205 = vmatmul.f32.gmra.mxu0 %v62
    %v206 = vpop.f32.mrf.mxu0
    %v207 = vadd.f32 %v135, %v206
    %208 = vmatmul.f32.gmra.mxu0 %v63
    %v209 = vpop.f32.mrf.mxu0
    %v210 = vadd.f32 %v135, %v209
    %211 = vmatmul.f32.gmra.mxu0 %v64
    %v212 = vpop.f32.mrf.mxu0
    %v213 = vadd.f32 %v135, %v212
    %214 = vmatmul.f32.gmra.mxu0 %v65
    %v215 = vpop.f32.mrf.mxu0
    %v216 = vadd.f32 %v135, %v215
    %217 = vmatmul.f32.gmra.mxu0 %v66
    %v218 = vpop.f32.mrf.mxu0
    %v219 = vadd.f32 %v135, %v218
    %220 = vmatmul.f32.gmra.mxu0 %v67
    %v221 = vpop.f32.mrf.mxu0
    %v222 = vadd.f32 %v135, %v221
    %223 = vdwg.mxu0
    %224 = vmatpush.msra.mxu0 %v130
    %225 = vmatpush.msra.mxu0 %v126
    %226 = vmatpush.msra.mxu0 %v122
    %227 = vmatpush.msra.mxu0 %v118
    %228 = vmatpush.msra.mxu0 %v114
    %229 = vmatpush.msra.mxu0 %v110
    %230 = vmatpush.msra.mxu0 %v106
    %231 = vmatpush.msra.mxu0 %v102
    %232 = vmatpush.msra.mxu0 %v98
    %233 = vmatpush.msra.mxu0 %v94
    %234 = vmatpush.msra.mxu0 %v90
    %235 = vmatpush.msra.mxu0 %v86
    %236 = vmatpush.msra.mxu0 %v82
    %237 = vmatpush.msra.mxu0 %v78
    %238 = vmatpush.msra.mxu0 %v74
    %239 = vmatpush.msra.mxu0 %v70
    %240 = vmatmul.f32.gmra.mxu0 %v60
    %v241 = vpop.f32.mrf.mxu0
    %v242 = vadd.f32 %v136, %v241
    %243 = vmatmul.f32.gmra.mxu0 %v61
    %v244 = vpop.f32.mrf.mxu0
    %v245 = vadd.f32 %v136, %v244
    %246 = vmatmul.f32.gmra.mxu0 %v62
    %v247 = vpop.f32.mrf.mxu0
    %v248 = vadd.f32 %v136, %v247
    %249 = vmatmul.f32.gmra.mxu0 %v63
    %v250 = vpop.f32.mrf.mxu0
    %v251 = vadd.f32 %v136, %v250
    %252 = vmatmul.f32.gmra.mxu0 %v64
    %v253 = vpop.f32.mrf.mxu0
    %v254 = vadd.f32 %v136, %v253
    %255 = vmatmul.f32.gmra.mxu0 %v65
    %v256 = vpop.f32.mrf.mxu0
    %v257 = vadd.f32 %v136, %v256
    %258 = vmatmul.f32.gmra.mxu0 %v66
    %v259 = vpop.f32.mrf.mxu0
    %v260 = vadd.f32 %v136, %v259
    %261 = vmatmul.f32.gmra.mxu0 %v67
    %v262 = vpop.f32.mrf.mxu0
    %v263 = vadd.f32 %v136, %v262
    %264 = vdwg.mxu0
    %265 = vmatpush.msra.mxu0 %v131
    %266 = vmatpush.msra.mxu0 %v127
    %267 = vmatpush.msra.mxu0 %v123
    %268 = vmatpush.msra.mxu0 %v119
    %269 = vmatpush.msra.mxu0 %v115
    %270 = vmatpush.msra.mxu0 %v111
    %271 = vmatpush.msra.mxu0 %v107
    %272 = vmatpush.msra.mxu0 %v103
    %273 = vmatpush.msra.mxu0 %v99
    %274 = vmatpush.msra.mxu0 %v95
    %275 = vmatpush.msra.mxu0 %v91
    %276 = vmatpush.msra.mxu0 %v87
    %277 = vmatpush.msra.mxu0 %v83
    %278 = vmatpush.msra.mxu0 %v79
    %279 = vmatpush.msra.mxu0 %v75
    %280 = vmatpush.msra.mxu0 %v71
    %281 = vmatmul.f32.gmra.mxu0 %v60
    %v282 = vpop.f32.mrf.mxu0
    %v283 = vadd.f32 %v137, %v282
    %284 = vmatmul.f32.gmra.mxu0 %v61
    %v285 = vpop.f32.mrf.mxu0
    %v286 = vadd.f32 %v137, %v285
    %287 = vmatmul.f32.gmra.mxu0 %v62
    %v288 = vpop.f32.mrf.mxu0
    %v289 = vadd.f32 %v137, %v288
    %290 = vmatmul.f32.gmra.mxu0 %v63
    %v291 = vpop.f32.mrf.mxu0
    %v292 = vadd.f32 %v137, %v291
    %293 = vmatmul.f32.gmra.mxu0 %v64
    %v294 = vpop.f32.mrf.mxu0
    %v295 = vadd.f32 %v137, %v294
    %296 = vmatmul.f32.gmra.mxu0 %v65
    %v297 = vpop.f32.mrf.mxu0
    %v298 = vadd.f32 %v137, %v297
    %299 = vmatmul.f32.gmra.mxu0 %v66
    %v300 = vpop.f32.mrf.mxu0
    %v301 = vadd.f32 %v137, %v300
    %302 = vmatmul.f32.gmra.mxu0 %v67
    %v303 = vpop.f32.mrf.mxu0
    %v304 = vadd.f32 %v137, %v303
    %305 = vdwg.mxu0
    %306 = vst [vmem:[#allocation8] sm:$0xff] %v160
    %307 = vst [vmem:[#allocation8 + $0x8] sm:$0xff] %v201
    %308 = vst [vmem:[#allocation8 + $0x10] sm:$0xff] %v242
    %309 = vst [vmem:[#allocation8 + $0x18] sm:$0xff] %v283
    %310 = vst [vmem:[#allocation8 + $0x20] sm:$0xff] %v163
    %311 = vst [vmem:[#allocation8 + $0x28] sm:$0xff] %v204
    %312 = vst [vmem:[#allocation8 + $0x30] sm:$0xff] %v245
    %313 = vst [vmem:[#allocation8 + $0x38] sm:$0xff] %v286
    %314 = vst [vmem:[#allocation8 + $0x40] sm:$0xff] %v166
    %315 = vst [vmem:[#allocation8 + $0x48] sm:$0xff] %v207
    %316 = vst [vmem:[#allocation8 + $0x50] sm:$0xff] %v248
    %317 = vst [vmem:[#allocation8 + $0x58] sm:$0xff] %v289
    %318 = vst [vmem:[#allocation8 + $0x60] sm:$0xff] %v169
    %319 = vst [vmem:[#allocation8 + $0x68] sm:$0xff] %v210
    %320 = vst [vmem:[#allocation8 + $0x70] sm:$0xff] %v251
    %321 = vst [vmem:[#allocation8 + $0x78] sm:$0xff] %v292
    %322 = vst [vmem:[#allocation8 + $0x80] sm:$0xff] %v172
    %323 = vst [vmem:[#allocation8 + $0x88] sm:$0xff] %v213
    %324 = vst [vmem:[#allocation8 + $0x90] sm:$0xff] %v254
    %325 = vst [vmem:[#allocation8 + $0x98] sm:$0xff] %v295
    %326 = vst [vmem:[#allocation8 + $0xa0] sm:$0xff] %v175
    %327 = vst [vmem:[#allocation8 + $0xa8] sm:$0xff] %v216
    %328 = vst [vmem:[#allocation8 + $0xb0] sm:$0xff] %v257
    %329 = vst [vmem:[#allocation8 + $0xb8] sm:$0xff] %v298
    %330 = vst [vmem:[#allocation8 + $0xc0] sm:$0xff] %v178
    %331 = vst [vmem:[#allocation8 + $0xc8] sm:$0xff] %v219
    %332 = vst [vmem:[#allocation8 + $0xd0] sm:$0xff] %v260
    %333 = vst [vmem:[#allocation8 + $0xd8] sm:$0xff] %v301
    %334 = vst [vmem:[#allocation8 + $0xe0] sm:$0xff] %v181
    %335 = vst [vmem:[#allocation8 + $0xe8] sm:$0xff] %v222
    %336 = vst [vmem:[#allocation8 + $0xf0] sm:$0xff] %v263
    %337 = vst [vmem:[#allocation8 + $0xf8] sm:$0xff] %v304
    // Predicated region
    $region26: #{tpu_custom_call.1} parent=1 // pred_check
      _
    $region27: #{tpu_custom_call.1} parent=1 // pred_check_branch
      %339 = sbr.rel (0) target = $region29
    $region28: #{tpu_custom_call.1} parent=1 // pred_region
      %341 = vsyncadd [#allocation4], 0
      %s342 = sshll.u32 [#allocation8], 4
      %s343 = int_to_ptr.vmem [resolvable:$true] %s342
      %s344 = sshll.u32 %s3, 4
      %s345 = int_to_ptr.hbm [resolvable:$true] %s344
      %350 = dma.vmem_to_hbm [thread:$0]  %s343, 4096, %s345, [#allocation4], 512, 512, 32
    $region29: #{tpu_custom_call.1} parent=1 // pred_fallthru
      _
    // Predicated region
    $region30: #{tpu_custom_call.1} parent=1 // pred_check
      _
    $region31: #{tpu_custom_call.1} parent=1 // pred_check_branch
      %352 = sbr.rel (0) target = $region33
    $region32: #{tpu_custom_call.1} parent=1 // pred_region
      %354 = dma.done [#allocation4], 4096
    $region33: #{tpu_custom_call.1} parent=1 // pred_fallthru
      _
    %355 = vsyncpa [#allocation3], 1
    %356 = vsyncpa [#allocation6], 1
    %357 = vsyncpa [#allocation4], 1

</llo_original>
